<compile_context>
chip_gen: v7x
topology: tpu7x:2x2x1
jax: 0.10.0
libtpu: 0.0.40
codegen_flags: <defaults>
</compile_context>

<pallas_src>
import functools

import jax
import jax.numpy as jnp
from jax import lax
from jax.experimental import pallas as pl
from jax.experimental.pallas import tpu as pltpu

_KNUTH_PRIME = 2654435761  # 2^32 * golden-ratio conjugate, classic mult. hash

# Minimal sublane multiple for the second-to-last block dim, per input itemsize.
_SUBLANE = {4: 8, 2: 16, 1: 32}


def _hash_bits(bits, m):
    """Map uint32 bit patterns to float32 bucket ids in [0, m).

    Pure jnp ops, shared by the Pallas kernel body and the tiny wrapper tail
    path so both produce bit-identical results.
    """
    if m == 1:
        return jnp.zeros(bits.shape, jnp.float32)
    h = bits * jnp.uint32(_KNUTH_PRIME)  # natural uint32 wraparound
    if (m & (m - 1)) == 0:
        # Power-of-two m: take the top log2(m) bits -> exact integer bucket.
        k = m.bit_length() - 1
        top = jnp.right_shift(h, jnp.uint32(32 - k))
        if k <= 31:
            # int32 view (top < 2^31) avoids the costly u32->f32 convert.
            return top.astype(jnp.int32).astype(jnp.float32)
        return top.astype(jnp.float32)
    # General m: top 24 bits (exactly representable in f32), scaled into
    # [0, m), floored, clamped to m-1 to guard the rounding edge at the top.
    # NOTE: buckets on the top 24 hash bits, not h mod m (slightly non-uniform
    # for m not dividing 2^24) — an intentional, documented semantic choice.
    h24 = jnp.right_shift(h, jnp.uint32(8)).astype(jnp.int32).astype(jnp.float32)
    bucket = jnp.floor(h24 * jnp.float32(m / float(1 << 24)))
    return jnp.minimum(bucket, jnp.float32(m - 1))


def _hash_kernel(x_ref, o_ref, *, m):
    """Element-wise hash of a (block_rows, lanes) tile into [0, m)."""
    x = x_ref[...]
    if x.dtype != jnp.float32:
        # In-kernel widening: no separate XLA cast pass over HBM.
        # TODO(synk): non-f32 inputs are hashed on their f32-cast bit pattern,
        # not their native bits (the reference's hash() is abstract).
        x = x.astype(jnp.float32)
    bits = pltpu.bitcast(x, jnp.uint32)
    o_ref[...] = _hash_bits(bits, m)


def _hash_tail_jnp(x_flat_f32, m):
    bits = lax.bitcast_convert_type(x_flat_f32, jnp.uint32)
    return _hash_bits(bits, m)


class Hash:
    """JAX/Pallas port of pugh_torch.modules.hash.Hash."""

    def __init__(self, m: int):
        assert isinstance(m, int)
        self.dim_int = m
        # Mirrors the (non-trainable) nn.Parameter holding the hash size.
        self.dim = jnp.array([float(m)], dtype=jnp.float32)

    def hash(self, x):
        orig_shape = x.shape
        m = self.dim_int
        n = x.size

        if n == 0:
            return jnp.zeros(orig_shape, jnp.float32)
        if m == 1:
            # Degenerate hash: every element maps to bucket 0; skip the launch
            # (and all HBM traffic) entirely.
            return jnp.zeros(orig_shape, jnp.float32)

        flat = x.reshape(-1)

        # Lane-dense last dim (multiple of 128) for unmasked full-width stores.
        lanes = 512 if n >= 512 else 128
        rem = n % lanes
        n_main = n - rem

        parts = []
        if n_main > 0:
            rows = n_main // lanes
            prefix = flat if rem == 0 else flat[:n_main]
            x2d = prefix.reshape(rows, lanes)

            itemsize = jnp.dtype(x.dtype).itemsize
            sub = _SUBLANE.get(itemsize, 8)
            # ~2 MiB f32 output block cap; double-buffered in+out <= ~8 MiB.
            max_block_rows = max(sub, ((2 << 20) // (lanes * 4)) // sub * sub)
            if rows <= sub:
                block_rows = rows  # equals full extent -> always legal
            else:
                # Aim for >= ~8 grid steps so each v7x TensorCore gets several
                # pipelined steps; clamp to the VMEM budget. Ragged last block
                # is handled by Pallas masking.
                target = (rows // 8) // sub * sub
                block_rows = max(sub, min(max_block_rows,
                                          target if target > 0 else sub))
            grid = pl.cdiv(rows, block_rows)

            kernel = functools.partial(_hash_kernel, m=m)
            out2d = pl.pallas_call(
                kernel,
                out_shape=jax.ShapeDtypeStruct((rows, lanes), jnp.float32),
                grid=(grid,),
                in_specs=[pl.BlockSpec((block_rows, lanes), lambda i: (i, 0))],
                out_specs=pl.BlockSpec((block_rows, lanes), lambda i: (i, 0)),
                compiler_params=pltpu.CompilerParams(
                    dimension_semantics=("parallel",)
                ),
            )(x2d)
            parts.append(out2d.reshape(-1))

        if rem > 0:
            # Tiny (< lanes) tail hashed with a handful of jnp ops; this also
            # covers inputs smaller than one lane row.
            tail = flat[n_main:]
            if tail.dtype != jnp.float32:
                tail = tail.astype(jnp.float32)
            parts.append(_hash_tail_jnp(tail, m))

        out = parts[0] if len(parts) == 1 else jnp.concatenate(parts)
        return out.reshape(orig_shape)

    def __call__(self, x):
        return self.hash(x)


if __name__ == "__main__":
    key = jax.random.PRNGKey(0)
    x = jax.random.normal(key, (2, 4, 16, 16), dtype=jnp.float32)

    m = 64
    module = Hash(m)

    y = jax.block_until_ready(module(x))

    # Sanity checks: shape preserved, values are integer bucket ids in [0, m).
    assert y.shape == x.shape, (y.shape, x.shape)
    assert bool(jnp.all(y >= 0.0)) and bool(jnp.all(y < m))
    assert bool(jnp.all(y == jnp.floor(y)))

    # Cross-check the power-of-two path against a pure-JAX reference.
    bits = lax.bitcast_convert_type(x, jnp.uint32)
    ref = jnp.right_shift(bits * jnp.uint32(_KNUTH_PRIME), jnp.uint32(26))
    assert bool(jnp.all(y == ref.astype(jnp.float32)))

    # Exercise the in-kernel-cast (bf16), ragged-last-block and unaligned-tail
    # paths with a second small input (4*41*64 = 10496 elems, 10496 % 512 != 0).
    x2 = jax.random.normal(jax.random.PRNGKey(1), (4, 41, 64), dtype=jnp.bfloat16)
    y2 = jax.block_until_ready(module(x2))
    assert y2.shape == x2.shape
    assert bool(jnp.all(y2 >= 0.0)) and bool(jnp.all(y2 < m))
    bits2 = lax.bitcast_convert_type(x2.astype(jnp.float32), jnp.uint32)
    ref2 = jnp.right_shift(bits2 * jnp.uint32(_KNUTH_PRIME), jnp.uint32(26))
    assert bool(jnp.all(y2 == ref2.astype(jnp.float32)))

    print("KERNEL_OK")
</pallas_src>

<mosaic_0001>
module attributes {stable_mosaic.version = 11 : i64} {
  func.func @_hash_kernel(%arg0: i32, %arg1: memref<4x512xf32, #tpu.memory_space<vmem>>, %arg2: memref<4x512xf32, #tpu.memory_space<vmem>>) attributes {dimension_semantics = [#tpu.dimension_semantics<parallel>], iteration_bounds = array<i64: 1>, scalar_prefetch = 0 : i64, scratch_operands = 0 : i64, tpu.core_type = #tpu.core_type<tc>, window_params = [{transform_indices = @transform_0, window_bounds = array<i64: 4, 512>}, {transform_indices = @transform_1, window_bounds = array<i64: 4, 512>}]} {
    %c0 = arith.constant 0 : index
    %c0_0 = arith.constant 0 : index
    %0 = vector.load %arg1[%c0, %c0_0] : memref<4x512xf32, #tpu.memory_space<vmem>>, vector<4x512xf32>
    %1 = tpu.bitcast %0 : vector<4x512xf32> -> vector<4x512xi32>
    %c-1640531535_i32 = arith.constant -1640531535 : i32
    %2 = vector.broadcast %c-1640531535_i32 : i32 to vector<4x512xi32>
    %3 = arith.muli %1, %2 : vector<4x512xi32>
    %c26_i32 = arith.constant 26 : i32
    %4 = vector.broadcast %c26_i32 : i32 to vector<4x512xi32>
    %5 = arith.shrui %3, %4 : vector<4x512xi32>
    %6 = arith.sitofp %5 : vector<4x512xi32> to vector<4x512xf32>
    %c0_1 = arith.constant 0 : index
    %c0_2 = arith.constant 0 : index
    %7 = vector.load %arg2[%c0_1, %c0_2] : memref<4x512xf32, #tpu.memory_space<vmem>>, vector<4x512xf32>
    tpu.vector_store %arg2[%c0_1, %c0_2], %6 {strides = array<i32>} : memref<4x512xf32, #tpu.memory_space<vmem>>, vector<4x512xf32>,
    return
  }
  func.func @transform_0(%arg0: i32) -> (i32, i32) {
    %c0_i32 = arith.constant 0 : i32
    %c0_i32_0 = arith.constant 0 : i32
    return %arg0, %c0_i32 : i32, i32
  }
  func.func @transform_1(%arg0: i32) -> (i32, i32) {
    %c0_i32 = arith.constant 0 : i32
    %c0_i32_0 = arith.constant 0 : i32
    return %arg0, %c0_i32 : i32, i32
  }
}

</mosaic_0001>

<llo_original>
// kernel: tpu_custom_call.1
$region0: #{tpu_custom_call.1}
  #allocation0 [shape = 'u32[]', space=smem, size = 0x4, offset = 0x4, fixed_abs, tag = 'smem constant byte address 0x4 - core index']
  #allocation1 [shape = 'u32[144,128]{1,0:T(1,128)}', space=vmem, size = 0x12000, scoped, tag = 'internal scratch']
  %s0 = inlined_call_operand.hbm [shape: f32[4,512], index: 0, kind: input, shape index: {}]
  %s1 = inlined_call_operand.hbm [shape: f32[4,512], index: 1, kind: output, shape index: {}]
  %s2 = sld [smem:[#allocation0]]
  $region18: #{tpu_custom_call.1} parent=0
    _
  %s4 = ssub.s32 1, %s2
  %s5 = scalar_select 0, %s4, %s2
  $region1: #{tpu_custom_call.1} parent=0
    #allocation2 [shape = 'u8[8192]{0}', space=vmem, size = 0x2000, scoped, tag = 'input window, operand 0, single buffered']
    #allocation3 [shape = 's32[1]{0}', space=sflag, size = 0x4, scoped, tag = 'scoped memory for tpu_custom_call.1']
    #allocation4 [shape = 's32[1]{0}', space=sflag, size = 0x4, scoped, tag = 'scoped memory for tpu_custom_call.1']
    #allocation5 [shape = 'u8[8192]{0}', space=vmem, size = 0x2000, scoped, tag = 'output window, operand 0, single buffered']
    %6 = vsyncpa [#allocation3], 0
    %7 = vsyncpa [#allocation4], 0
    // Predicated region
    $region2: #{tpu_custom_call.1} parent=1 // pred_check
      _
    $region3: #{tpu_custom_call.1} parent=1 // pred_check_branch
      %9 = sbr.rel (0) target = $region5
    $region4: #{tpu_custom_call.1} parent=1 // pred_region
      %s11 = ssub.s32 256, 256
      %12 = vsyncadd [#allocation3], %s11
      %s14 = sshll.u32 [#allocation2], 4
      %s15 = int_to_ptr.vmem [resolvable:$true] %s14
      %17 = dma.hbm_to_vmem [thread:$0]  %s0, 256, %s15, [#allocation3]
    $region5: #{tpu_custom_call.1} parent=1 // pred_fallthru
      _
    // Predicated region
    $region6: #{tpu_custom_call.1} parent=1 // pred_check
      _
    $region7: #{tpu_custom_call.1} parent=1 // pred_check_branch
      %19 = sbr.rel (0) target = $region9
    $region8: #{tpu_custom_call.1} parent=1 // pred_region
      %20 = dma.done [#allocation3], 256
    $region9: #{tpu_custom_call.1} parent=1 // pred_fallthru
      _
    %v21 = vld [vmem:[#allocation2] sm:$0xff]
    %v22 = vld [vmem:[#allocation2 + $0x8] sm:$0xff]
    %v25 = vcombine.high %v21, %v21
    %v26 = vcombine.high %v22, %v22
    %v27 = vmul.u32 %v21, 2654435761
    %v28 = vmul.u32 %v25, 2654435761
    %v29 = vmul.u32 %v22, 2654435761
    %v30 = vmul.u32 %v26, 2654435761
    %v31 = vshrl.u32 %v27, 26
    %v32 = vshrl.u32 %v28, 26
    %v33 = vshrl.u32 %v29, 26
    %v34 = vshrl.u32 %v30, 26
    %v35 = vcvt.s32.f32 %v31
    %v36 = vcvt.s32.f32 %v32
    %v37 = vcvt.s32.f32 %v33
    %v38 = vcvt.s32.f32 %v34
    %v43 = vcombine.low %v35, %v36
    %v44 = vcombine.low %v37, %v38
    %47 = vst [vmem:[#allocation5] sm:$0xff] %v43
    %48 = vst [vmem:[#allocation5 + $0x8] sm:$0xff] %v44
    // Predicated region
    $region10: #{tpu_custom_call.1} parent=1 // pred_check
      _
    $region11: #{tpu_custom_call.1} parent=1 // pred_check_branch
      %50 = sbr.rel (0) target = $region13
    $region12: #{tpu_custom_call.1} parent=1 // pred_region
      %s52 = ssub.s32 256, 256
      %53 = vsyncadd [#allocation4], %s52
      %s55 = sshll.u32 [#allocation5], 4
      %s56 = int_to_ptr.vmem [resolvable:$true] %s55
      %58 = dma.vmem_to_hbm [thread:$0]  %s56, 256, %s1, [#allocation4]
    $region13: #{tpu_custom_call.1} parent=1 // pred_fallthru
      _
    // Predicated region
    $region14: #{tpu_custom_call.1} parent=1 // pred_check
      _
    $region15: #{tpu_custom_call.1} parent=1 // pred_check_branch
      %60 = sbr.rel (0) target = $region17
    $region16: #{tpu_custom_call.1} parent=1 // pred_region
      %61 = dma.done [#allocation4], 256
    $region17: #{tpu_custom_call.1} parent=1 // pred_fallthru
      _
    %62 = vsyncpa [#allocation3], 1
    %63 = vsyncpa [#allocation4], 1

</llo_original>
